<compile_context>
chip_gen: v7x
topology: tpu7x:2x2x1
jax: 0.10.0
libtpu: 0.0.40
codegen_flags: <defaults>
</compile_context>

<pallas_src>
import functools
import math

import jax
import jax.numpy as jnp
from jax.experimental import pallas as pl
from jax.experimental.pallas import tpu as pltpu


def topo_nn_kernel(key_ref, as_ref, av_ref, bf_ref, out_ref, *, num_heads):
    # key_ref: (TB, S, hs)    batch tile of the `key` input
    # as_ref : (hs, H*ts)     fused score weights  (per head: Wk_h @ q_pre_h^T)
    # av_ref : (hs, H)        fused value read-out (per head: Wv_h @ (Wo@wp)_h)
    # bf_ref : (1, 1) SMEM    fused scalar bias (bo@wp + bp + bv@(Wo@wp))
    # out_ref: (ts, TB)       lane-dense logits tile (batch on the lane axis)
    tb, S, hs = key_ref.shape
    ts = out_ref.shape[0]
    H = num_heads
    n_s = H * ts

    # One streamed key tile feeds both fused dots (M = TB*S): scores + value read-out.
    key2d = key_ref[...].reshape(tb * S, hs)            # free sublane merge (S % 8 == 0)
    scores = jnp.dot(key2d, as_ref[...],
                     preferred_element_type=jnp.float32)          # (TB*S, H*ts)
    vproj = jnp.dot(key2d, av_ref[...],
                    preferred_element_type=jnp.float32)           # (TB*S, H)

    scores = scores.reshape(tb, S, n_s)                 # free sublane split
    vproj = vproj.reshape(tb, S, H)

    # Softmax over the key axis S (sublane reductions); normalization deferred.
    m = jnp.max(scores, axis=1, keepdims=True)                    # (TB, 1, H*ts)
    p = jnp.exp(scores - m)                                       # (TB, S, H*ts)
    denom = jnp.sum(p, axis=1)                                    # (TB, H*ts)

    if H == 1:
        numer = jnp.sum(p * vproj, axis=1)                        # (TB, ts)
        logit = numer * pl.reciprocal(denom) + bf_ref[0, 0]       # (TB, ts)
    else:
        # TODO(synk): pack the fused weights head-major so these lane slices (at
        # non-128 offsets) go away for H > 1; H == 1 in this test, branch untraced.
        acc = jnp.zeros((tb, ts), jnp.float32)
        for h in range(H):
            numer_h = jnp.sum(p[:, :, h * ts:(h + 1) * ts] * vproj[:, :, h:h + 1],
                              axis=1)
            acc = acc + numer_h * pl.reciprocal(denom[:, h * ts:(h + 1) * ts])
        logit = acc + bf_ref[0, 0]

    # MXU-based relayout to the lane-dense (ts, TB) output layout:
    #   logit_t[q, b] = sum_j eye[q, j] * logit[b, j]
    r = jax.lax.broadcasted_iota(jnp.int32, (ts, ts), 0)
    c = jax.lax.broadcasted_iota(jnp.int32, (ts, ts), 1)
    eye = jnp.where(r == c, 1.0, 0.0)
    logit_t = jax.lax.dot_general(eye, logit, (((1,), (1,)), ((), ())),
                                  preferred_element_type=jnp.float32)   # (ts, TB)

    out_ref[...] = pl.reciprocal(1.0 + jnp.exp(-logit_t)).astype(out_ref.dtype)


def topo_nn_forward(key, params, *, num_heads=1, batch_tile=None,
                    key_buffers=None, vmem_limit_bytes=None):
    bs, S, hs = key.shape
    ts = params["topo_query"].shape[0]
    hd = hs // num_heads
    assert hd * num_heads == hs
    # TODO(synk): if production S is not a multiple of 8, pad the keys and mask the
    # padded rows out of the softmax so the in-kernel reshape stays a free sublane merge.

    # Batch tiling.  Default: one fat tile (single TensorCore).  On v7x pick batch_tile
    # so the grid has >= 2 "parallel" blocks (2 TCs) and re-derive TB against 64 MiB
    # VMEM; on v5e/v6e maximize TB (128 MiB VMEM, ~0.35 us per grid step).  Keep TB a
    # multiple of 128 in production so the (ts, TB) output stores are full-lane.
    tb = bs if batch_tile is None else batch_tile
    assert bs % tb == 0
    n_blocks = bs // tb

    # --- one-off algebraic folding (tiny XLA GEMMs outside the kernel) ----------------
    scale = 1.0 / math.sqrt(hd)
    q_pre = (params["topo_query"] @ params["wq"] + params["bq"]) * scale     # (ts, hs)
    w_fused = (params["wo"] @ params["wp"]).T                                # (1, hs)
    # bk dropped (softmax shift-invariance); bv folded via sum(attn weights) == 1.
    b_fused = (params["bo"] @ params["wp"] + params["bp"]
               + params["bv"] @ (params["wo"] @ params["wp"]))               # (1, 1)
    b_fused = b_fused.astype(jnp.float32)

    score_cols = [params["wk"][:, h * hd:(h + 1) * hd] @ q_pre[:, h * hd:(h + 1) * hd].T
                  for h in range(num_heads)]                                 # (hs, ts) each
    vproj_cols = [params["wv"][:, h * hd:(h + 1) * hd] @ w_fused[:, h * hd:(h + 1) * hd].T
                  for h in range(num_heads)]                                 # (hs, 1) each
    a_scores = jnp.concatenate(score_cols, axis=1).astype(jnp.float32)       # (hs, H*ts)
    a_vproj = jnp.concatenate(vproj_cols, axis=1).astype(jnp.float32)        # (hs, H)
    cols = num_heads * (ts + 1)

    if vmem_limit_bytes is None:
        # double-buffered key tile + fused weights + output tile + softmax intermediates
        est = 4 * (2 * tb * S * hs + 2 * hs * cols + 2 * ts * tb + 8 * tb * S * cols)
        # v5e/v6e: free to raise toward ~96 MiB; v7x: keep <= ~48 MiB (64 MiB physical).
        vmem_limit_bytes = int(min(max(est + (4 << 20), 16 << 20), 64 << 20))

    key_spec_kwargs = {}
    if key_buffers is not None:          # e.g. 3 on v5e to hide the key-tile DMA
        key_spec_kwargs["pipeline_mode"] = pl.Buffered(key_buffers)
    key_spec = pl.BlockSpec((tb, S, hs), lambda b: (b, 0, 0), **key_spec_kwargs)

    out_t = pl.pallas_call(
        functools.partial(topo_nn_kernel, num_heads=num_heads),
        out_shape=jax.ShapeDtypeStruct((ts, bs), jnp.float32),
        grid=(n_blocks,),
        in_specs=[
            key_spec,                                              # key batch tile
            pl.BlockSpec((hs, num_heads * ts), lambda b: (0, 0)),  # fused score weights
            pl.BlockSpec((hs, num_heads), lambda b: (0, 0)),       # fused value read-out
            pl.BlockSpec(memory_space=pltpu.MemorySpace.SMEM),     # fused scalar bias
        ],
        out_specs=pl.BlockSpec((ts, tb), lambda b: (0, b)),
        compiler_params=pltpu.CompilerParams(
            dimension_semantics=("parallel",),
            vmem_limit_bytes=vmem_limit_bytes),
    )(key, a_scores, a_vproj, b_fused)

    return out_t.T[..., None]                                      # (bs, ts, 1)


def init_params(rng, hs, ts):
    """Deterministic synthetic init matching TopoNN's parameter shapes."""
    ks = jax.random.split(rng, 8)
    # nn.MultiheadAttention: in_proj_weight (3*hs, hs), in_proj_bias (3*hs,),
    # out_proj Linear(hs, hs); final out_proj Linear(hs, 1).
    in_proj_w = jax.random.normal(ks[0], (3 * hs, hs), jnp.float32) * 0.1
    in_proj_b = jax.random.normal(ks[1], (3 * hs,), jnp.float32) * 0.1
    wo = jax.random.normal(ks[2], (hs, hs), jnp.float32) * 0.1
    bo = jax.random.normal(ks[3], (hs,), jnp.float32) * 0.1
    wp = jax.random.normal(ks[4], (1, hs), jnp.float32) * 0.1
    bp = jax.random.normal(ks[5], (1,), jnp.float32) * 0.1
    topo_query = jax.random.normal(ks[6], (ts, hs), jnp.float32)
    return {
        "topo_query": topo_query,
        # pre-transpose so forward computes x @ W  (PyTorch applies x @ W^T)
        "wq": in_proj_w[0 * hs:1 * hs].T,
        "wk": in_proj_w[1 * hs:2 * hs].T,
        "wv": in_proj_w[2 * hs:3 * hs].T,
        "bq": in_proj_b[0 * hs:1 * hs].reshape(1, hs),
        "bk": in_proj_b[1 * hs:2 * hs].reshape(1, hs),
        "bv": in_proj_b[2 * hs:3 * hs].reshape(1, hs),
        "wo": wo.T,
        "bo": bo.reshape(1, hs),
        "wp": wp.T,                # (hs, 1)
        "bp": bp.reshape(1, 1),
    }


def reference_forward(key, params, *, num_heads=1):
    """Plain-JAX reference replicating nn.MultiheadAttention (batch_first), un-fused."""
    bs, S, hs = key.shape
    ts = params["topo_query"].shape[0]
    hd = hs // num_heads
    q = params["topo_query"][None] @ params["wq"] + params["bq"]      # (1, ts, hs)
    q = jnp.broadcast_to(q, (bs, ts, hs))
    k = key @ params["wk"] + params["bk"]
    v = key @ params["wv"] + params["bv"]
    qh = q.reshape(bs, ts, num_heads, hd).transpose(0, 2, 1, 3)
    kh = k.reshape(bs, S, num_heads, hd).transpose(0, 2, 1, 3)
    vh = v.reshape(bs, S, num_heads, hd).transpose(0, 2, 1, 3)
    s = jnp.einsum("bhqd,bhkd->bhqk", qh, kh) / math.sqrt(hd)
    p = jax.nn.softmax(s, axis=-1)
    a = jnp.einsum("bhqk,bhkd->bhqd", p, vh).transpose(0, 2, 1, 3).reshape(bs, ts, hs)
    o = a @ params["wo"] + params["bo"]
    return jax.nn.sigmoid(o @ params["wp"] + params["bp"])


if __name__ == "__main__":
    bs, S, hs, ts, num_heads = 2, 8, 32, 8, 1

    root = jax.random.PRNGKey(0)
    k_params, k_key = jax.random.split(root)
    params = init_params(k_params, hs, ts)
    key_input = jax.random.normal(k_key, (bs, S, hs), jnp.float32)

    out = topo_nn_forward(key_input, params, num_heads=num_heads)
    out = jax.block_until_ready(out)

    ref = reference_forward(key_input, params, num_heads=num_heads)
    assert out.shape == (bs, ts, 1), out.shape
    assert jnp.allclose(out, ref, atol=1e-5, rtol=1e-5), (
        float(jnp.max(jnp.abs(out - ref))))

    print("KERNEL_OK")
</pallas_src>

<mosaic_0001>
module attributes {stable_mosaic.version = 11 : i64} {
  func.func @topo_nn_kernel(%arg0: i32, %arg1: memref<2x8x32xf32, #tpu.memory_space<vmem>>, %arg2: memref<32x8xf32, #tpu.memory_space<vmem>>, %arg3: memref<32x1xf32, #tpu.memory_space<vmem>>, %arg4: memref<1x1xf32, #tpu.memory_space<smem>>, %arg5: memref<8x2xf32, #tpu.memory_space<vmem>>) attributes {dimension_semantics = [#tpu.dimension_semantics<parallel>], iteration_bounds = array<i64: 1>, scalar_prefetch = 0 : i64, scratch_operands = 0 : i64, tpu.core_type = #tpu.core_type<tc>, window_params = [{transform_indices = @transform_0, window_bounds = array<i64: 2, 8, 32>}, {pipeline_mode = #tpu.pipeline_mode<synchronous>, transform_indices = @transform_1, window_bounds = array<i64: 32, 8>}, {pipeline_mode = #tpu.pipeline_mode<synchronous>, transform_indices = @transform_2, window_bounds = array<i64: 32, 1>}, {transform_indices = @transform_3, window_bounds = array<i64: 1, 1>}, {transform_indices = @transform_4, window_bounds = array<i64: 8, 2>}]} {
    %c0 = arith.constant 0 : index
    %c0_0 = arith.constant 0 : index
    %c0_1 = arith.constant 0 : index
    %0 = vector.load %arg1[%c0, %c0_0, %c0_1] : memref<2x8x32xf32, #tpu.memory_space<vmem>>, vector<2x8x32xf32>
    %1 = vector.shape_cast %0 : vector<2x8x32xf32> to vector<16x32xf32>
    %c0_2 = arith.constant 0 : index
    %c0_3 = arith.constant 0 : index
    %2 = vector.load %arg2[%c0_2, %c0_3] : memref<32x8xf32, #tpu.memory_space<vmem>>, vector<32x8xf32>
    %cst = arith.constant dense<0.000000e+00> : vector<16x8xf32>
    %3 = tpu.matmul %1, %2, %cst {dimension_numbers = #tpu.dot_dimension_numbers<[1], [0], [0], [1], [0, 0, 1, 1], [], []>} : vector<16x32xf32>, vector<32x8xf32>, vector<16x8xf32> -> vector<16x8xf32>
    %c0_4 = arith.constant 0 : index
    %c0_5 = arith.constant 0 : index
    %4 = vector.load %arg3[%c0_4, %c0_5] : memref<32x1xf32, #tpu.memory_space<vmem>>, vector<32x1xf32>
    %cst_6 = arith.constant dense<0.000000e+00> : vector<16x1xf32>
    %5 = tpu.matmul %1, %4, %cst_6 {dimension_numbers = #tpu.dot_dimension_numbers<[1], [0], [0], [1], [0, 0, 1, 1], [], []>} : vector<16x32xf32>, vector<32x1xf32>, vector<16x1xf32> -> vector<16x1xf32>
    %6 = vector.shape_cast %3 : vector<16x8xf32> to vector<2x8x8xf32>
    %7 = vector.shape_cast %5 : vector<16x1xf32> to vector<2x8x1xf32>
    %cst_7 = arith.constant dense<0xFF800000> : vector<2x8xf32>
    %8 = vector.multi_reduction <maximumf>, %6, %cst_7 [1] : vector<2x8x8xf32> to vector<2x8xf32>
    %9 = vector.shape_cast %8 : vector<2x8xf32> to vector<2x1x8xf32>
    %10 = vector.broadcast %9 : vector<2x1x8xf32> to vector<2x8x8xf32>
    %11 = arith.subf %6, %10 : vector<2x8x8xf32>
    %12 = math.exp %11 : vector<2x8x8xf32>
    %cst_8 = arith.constant dense<0.000000e+00> : vector<2x8xf32>
    %13 = vector.multi_reduction <add>, %12, %cst_8 [1] : vector<2x8x8xf32> to vector<2x8xf32>
    %14 = vector.broadcast %7 : vector<2x8x1xf32> to vector<2x8x8xf32>
    %15 = arith.mulf %12, %14 : vector<2x8x8xf32>
    %cst_9 = arith.constant dense<0.000000e+00> : vector<2x8xf32>
    %16 = vector.multi_reduction <add>, %15, %cst_9 [1] : vector<2x8x8xf32> to vector<2x8xf32>
    %17 = tpu.reciprocal %13 : vector<2x8xf32> -> vector<2x8xf32>
    %18 = arith.mulf %16, %17 : vector<2x8xf32>
    %c0_10 = arith.constant 0 : index
    %c0_11 = arith.constant 0 : index
    %19 = memref.load %arg4[%c0_10, %c0_11] : memref<1x1xf32, #tpu.memory_space<smem>>
    %20 = vector.broadcast %19 : f32 to vector<2x8xf32>
    %21 = arith.addf %18, %20 : vector<2x8xf32>
    %22 = tpu.iota {dimensions = array<i32: 0>} : vector<8x8xi32>
    %23 = tpu.iota {dimensions = array<i32: 1>} : vector<8x8xi32>
    %24 = arith.cmpi eq, %22, %23 : vector<8x8xi32>
    %cst_12 = arith.constant 1.000000e+00 : f32
    %cst_13 = arith.constant 0.000000e+00 : f32
    %25 = vector.broadcast %cst_12 : f32 to vector<8x8xf32>
    %26 = vector.broadcast %cst_13 : f32 to vector<8x8xf32>
    %27 = arith.select %24, %25, %26 : vector<8x8xi1>, vector<8x8xf32>
    %cst_14 = arith.constant dense<0.000000e+00> : vector<8x2xf32>
    %28 = tpu.matmul %27, %21, %cst_14 {dimension_numbers = #tpu.dot_dimension_numbers<[1], [1], [0], [0], [0, 0, 1, 0], [], []>} : vector<8x8xf32>, vector<2x8xf32>, vector<8x2xf32> -> vector<8x2xf32>
    %cst_15 = arith.constant 0.000000e+00 : f32
    %29 = vector.broadcast %cst_15 : f32 to vector<8x2xf32>
    %30 = arith.subf %29, %28 : vector<8x2xf32>
    %31 = math.exp %30 : vector<8x2xf32>
    %cst_16 = arith.constant 1.000000e+00 : f32
    %32 = vector.broadcast %cst_16 : f32 to vector<8x2xf32>
    %33 = arith.addf %32, %31 : vector<8x2xf32>
    %34 = tpu.reciprocal %33 : vector<8x2xf32> -> vector<8x2xf32>
    %c0_17 = arith.constant 0 : index
    %c0_18 = arith.constant 0 : index
    %35 = vector.load %arg5[%c0_17, %c0_18] : memref<8x2xf32, #tpu.memory_space<vmem>>, vector<8x2xf32>
    tpu.vector_store %arg5[%c0_17, %c0_18], %34 {strides = array<i32>} : memref<8x2xf32, #tpu.memory_space<vmem>>, vector<8x2xf32>,
    return
  }
  func.func @transform_0(%arg0: i32) -> (i32, i32, i32) {
    %c0_i32 = arith.constant 0 : i32
    %c0_i32_0 = arith.constant 0 : i32
    %c0_i32_1 = arith.constant 0 : i32
    return %arg0, %c0_i32, %c0_i32_0 : i32, i32, i32
  }
  func.func @transform_1(%arg0: i32) -> (i32, i32) {
    %c0_i32 = arith.constant 0 : i32
    %c0_i32_0 = arith.constant 0 : i32
    %c0_i32_1 = arith.constant 0 : i32
    return %c0_i32, %c0_i32_0 : i32, i32
  }
  func.func @transform_2(%arg0: i32) -> (i32, i32) {
    %c0_i32 = arith.constant 0 : i32
    %c0_i32_0 = arith.constant 0 : i32
    %c0_i32_1 = arith.constant 0 : i32
    return %c0_i32, %c0_i32_0 : i32, i32
  }
  func.func @transform_3(%arg0: i32) -> (i32, i32) {
    %c0_i32 = arith.constant 0 : i32
    %c0_i32_0 = arith.constant 0 : i32
    %c0_i32_1 = arith.constant 0 : i32
    return %c0_i32, %c0_i32_0 : i32, i32
  }
  func.func @transform_4(%arg0: i32) -> (i32, i32) {
    %c0_i32 = arith.constant 0 : i32
    %c0_i32_0 = arith.constant 0 : i32
    return %c0_i32, %arg0 : i32, i32
  }
}

</mosaic_0001>

<llo_original>
// kernel: tpu_custom_call.1
$region0: #{tpu_custom_call.1}
  #allocation0 [shape = 'u32[]', space=smem, size = 0x4, offset = 0x4, fixed_abs, tag = 'smem constant byte address 0x4 - core index']
  #allocation1 [shape = 'u32[144,128]{1,0:T(1,128)}', space=vmem, size = 0x12000, scoped, tag = 'internal scratch']
  #allocation2 [shape = 'f32[1,1]{1,0:T(1,128)S(6)}', space=smem, size = 0x200, scoped, tag = 'scoped memory for tpu_custom_call.1']
  %s0 = inlined_call_operand.vmem [shape: f32[2,8,32], index: 0, kind: input, shape index: {}]
  %s1 = inlined_call_operand.vmem [shape: f32[32,8], index: 1, kind: input, shape index: {}]
  %s2 = inlined_call_operand.vmem [shape: f32[32,1], index: 2, kind: input, shape index: {}]
  %s3 = inlined_call_operand.<no memory space> [shape: f32[1,1], index: 3, kind: input, shape index: {}]
  %s4 = inlined_call_operand.vmem [shape: f32[8,2], index: 4, kind: output, shape index: {}]
  %s5 = sld [smem:[#allocation0]]
  $region26: #{tpu_custom_call.1} parent=0
    _
  %s7 = ssub.s32 1, %s5
  %s8 = scalar_select 0, %s7, %s5
  %9 = sst [smem:[#allocation2]] %s3
  // Predicated region
  $region2: #{tpu_custom_call.1} parent=0 // pred_check
    _
  $region3: #{tpu_custom_call.1} parent=0 // pred_check_branch
    %11 = sbr.rel (0) target = $region5
  $region4: #{tpu_custom_call.1} parent=0 // pred_region
    _
  $region5: #{tpu_custom_call.1} parent=0 // pred_fallthru
    _
  // Predicated region
  $region6: #{tpu_custom_call.1} parent=0 // pred_check
    _
  $region7: #{tpu_custom_call.1} parent=0 // pred_check_branch
    %13 = sbr.rel (0) target = $region9
  $region8: #{tpu_custom_call.1} parent=0 // pred_region
    _
  $region9: #{tpu_custom_call.1} parent=0 // pred_fallthru
    _
  // Predicated region
  $region10: #{tpu_custom_call.1} parent=0 // pred_check
    _
  $region11: #{tpu_custom_call.1} parent=0 // pred_check_branch
    %15 = sbr.rel (0) target = $region13
  $region12: #{tpu_custom_call.1} parent=0 // pred_region
    _
  $region13: #{tpu_custom_call.1} parent=0 // pred_fallthru
    _
  // Predicated region
  $region14: #{tpu_custom_call.1} parent=0 // pred_check
    _
  $region15: #{tpu_custom_call.1} parent=0 // pred_check_branch
    %17 = sbr.rel (0) target = $region17
  $region16: #{tpu_custom_call.1} parent=0 // pred_region
    _
  $region17: #{tpu_custom_call.1} parent=0 // pred_fallthru
    _
  %v18 = vld [vmem:[%s0] sm:$0xff]
  %v19 = vld [vmem:[%s0 + $0x8] sm:$0xff]
  %v20 = vld [vmem:[%s1] sm:$0xff]
  %v21 = vld [vmem:[%s1 + $0x8] sm:$0xff]
  %v22 = vld [vmem:[%s1 + $0x10] sm:$0xff]
  %v23 = vld [vmem:[%s1 + $0x18] sm:$0xff]
  %vm24 = vcmask 261120
  %v26 = vsel %vm24, %v18, 0
  %v29 = vsel %vm24, %v19, 0
  %31 = vmatprep.subr.mxu0 0.0
  %32 = vmatpush1.msra.mxu0 %v20
  %33 = vmatprep.subr.mxu0 0.0
  %34 = vmatpush1.msra.mxu0 %v21
  %35 = vmatprep.subr.mxu0 0.0
  %36 = vmatpush1.msra.mxu0 %v22
  %37 = vmatprep.subr.mxu0 0.0
  %38 = vmatpush1.msra.mxu0 %v23
  %39 = vmatprep.subr.mxu0 0.0
  %40 = vmatpush1.msra.mxu0 0.0
  %41 = vmatprep.subr.mxu0 0.0
  %42 = vmatpush1.msra.mxu0 0.0
  %43 = vmatprep.subr.mxu0 0.0
  %44 = vmatpush1.msra.mxu0 0.0
  %45 = vmatprep.subr.mxu0 0.0
  %46 = vmatpush1.msra.mxu0 0.0
  %47 = vmatprep.subr.mxu0 0.0
  %48 = vmatpush1.msra.mxu0 0.0
  %49 = vmatprep.subr.mxu0 0.0
  %50 = vmatpush1.msra.mxu0 0.0
  %51 = vmatprep.subr.mxu0 0.0
  %52 = vmatpush1.msra.mxu0 0.0
  %53 = vmatprep.subr.mxu0 0.0
  %54 = vmatpush1.msra.mxu0 0.0
  %55 = vmatprep.subr.mxu0 0.0
  %56 = vmatpush1.msra.mxu0 0.0
  %57 = vmatprep.subr.mxu0 0.0
  %58 = vmatpush1.msra.mxu0 0.0
  %59 = vmatprep.subr.mxu0 0.0
  %60 = vmatpush1.msra.mxu0 0.0
  %61 = vmatprep.subr.mxu0 0.0
  %62 = vmatpush1.msra.mxu0 0.0
  %63 = vmatprep.subr.mxu0 0.0
  %64 = vmatpush1.msra.mxu0 0.0
  %65 = vmatprep.subr.mxu0 0.0
  %66 = vmatpush1.msra.mxu0 0.0
  %67 = vmatprep.subr.mxu0 0.0
  %68 = vmatpush1.msra.mxu0 0.0
  %69 = vmatprep.subr.mxu0 0.0
  %70 = vmatpush1.msra.mxu0 0.0
  %71 = vmatprep.subr.mxu0 0.0
  %72 = vmatpush1.msra.mxu0 0.0
  %73 = vmatprep.subr.mxu0 0.0
  %74 = vmatpush1.msra.mxu0 0.0
  %75 = vmatprep.subr.mxu0 0.0
  %76 = vmatpush1.msra.mxu0 0.0
  %77 = vmatprep.subr.mxu0 0.0
  %78 = vmatpush1.msra.mxu0 0.0
  %79 = vmatprep.subr.mxu0 0.0
  %80 = vmatpush1.msra.mxu0 0.0
  %81 = vmatprep.subr.mxu0 0.0
  %82 = vmatpush1.msra.mxu0 0.0
  %83 = vmatprep.subr.mxu0 0.0
  %84 = vmatpush1.msra.mxu0 0.0
  %85 = vmatprep.subr.mxu0 0.0
  %86 = vmatpush1.msra.mxu0 0.0
  %87 = vmatprep.subr.mxu0 0.0
  %88 = vmatpush1.msra.mxu0 0.0
  %89 = vmatprep.subr.mxu0 0.0
  %90 = vmatpush1.msra.mxu0 0.0
  %91 = vmatprep.subr.mxu0 0.0
  %92 = vmatpush1.msra.mxu0 0.0
  %93 = vmatprep.subr.mxu0 0.0
  %94 = vmatpush1.msra.mxu0 0.0
  %95 = vmatprep.mubr.f32.mxu0 0.0
  %96 = vmatmul.mubr.f32.gmra.mrb[0].mxu0 %v26
  %v97 = vpop.f32.mrb[0].mxu0
  %v98 = vadd.f32 0.0, %v97
  %v99 = vpop.f32.mrb[0].mxu0
  %100 = vmatprep.mubr.f32.mxu0 0.0
  %101 = vmatmul.mubr.f32.gmra.mrb[0].mxu0 %v29
  %v102 = vpop.f32.mrb[0].mxu0
  %v103 = vadd.f32 0.0, %v102
  %v104 = vpop.f32.mrb[0].mxu0
  %105 = vdwg.mxu0
  %v106 = vld [vmem:[%s2] sm:$0xff]
  %v107 = vld [vmem:[%s2 + $0x8] sm:$0xff]
  %v108 = vld [vmem:[%s2 + $0x10] sm:$0xff]
  %v109 = vld [vmem:[%s2 + $0x18] sm:$0xff]
  %110 = vmatprep.subr.mxu0 0.0
  %111 = vmatpush1.msra.mxu0 %v106
  %112 = vmatprep.subr.mxu0 0.0
  %113 = vmatpush1.msra.mxu0 %v107
  %114 = vmatprep.subr.mxu0 0.0
  %115 = vmatpush1.msra.mxu0 %v108
  %116 = vmatprep.subr.mxu0 0.0
  %117 = vmatpush1.msra.mxu0 %v109
  %118 = vmatprep.subr.mxu0 0.0
  %119 = vmatpush1.msra.mxu0 0.0
  %120 = vmatprep.subr.mxu0 0.0
  %121 = vmatpush1.msra.mxu0 0.0
  %122 = vmatprep.subr.mxu0 0.0
  %123 = vmatpush1.msra.mxu0 0.0
  %124 = vmatprep.subr.mxu0 0.0
  %125 = vmatpush1.msra.mxu0 0.0
  %126 = vmatprep.subr.mxu0 0.0
  %127 = vmatpush1.msra.mxu0 0.0
  %128 = vmatprep.subr.mxu0 0.0
  %129 = vmatpush1.msra.mxu0 0.0
  %130 = vmatprep.subr.mxu0 0.0
  %131 = vmatpush1.msra.mxu0 0.0
  %132 = vmatprep.subr.mxu0 0.0
  %133 = vmatpush1.msra.mxu0 0.0
  %134 = vmatprep.subr.mxu0 0.0
  %135 = vmatpush1.msra.mxu0 0.0
  %136 = vmatprep.subr.mxu0 0.0
  %137 = vmatpush1.msra.mxu0 0.0
  %138 = vmatprep.subr.mxu0 0.0
  %139 = vmatpush1.msra.mxu0 0.0
  %140 = vmatprep.subr.mxu0 0.0
  %141 = vmatpush1.msra.mxu0 0.0
  %142 = vmatprep.subr.mxu0 0.0
  %143 = vmatpush1.msra.mxu0 0.0
  %144 = vmatprep.subr.mxu0 0.0
  %145 = vmatpush1.msra.mxu0 0.0
  %146 = vmatprep.subr.mxu0 0.0
  %147 = vmatpush1.msra.mxu0 0.0
  %148 = vmatprep.subr.mxu0 0.0
  %149 = vmatpush1.msra.mxu0 0.0
  %150 = vmatprep.subr.mxu0 0.0
  %151 = vmatpush1.msra.mxu0 0.0
  %152 = vmatprep.subr.mxu0 0.0
  %153 = vmatpush1.msra.mxu0 0.0
  %154 = vmatprep.subr.mxu0 0.0
  %155 = vmatpush1.msra.mxu0 0.0
  %156 = vmatprep.subr.mxu0 0.0
  %157 = vmatpush1.msra.mxu0 0.0
  %158 = vmatprep.subr.mxu0 0.0
  %159 = vmatpush1.msra.mxu0 0.0
  %160 = vmatprep.subr.mxu0 0.0
  %161 = vmatpush1.msra.mxu0 0.0
  %162 = vmatprep.subr.mxu0 0.0
  %163 = vmatpush1.msra.mxu0 0.0
  %164 = vmatprep.subr.mxu0 0.0
  %165 = vmatpush1.msra.mxu0 0.0
  %166 = vmatprep.subr.mxu0 0.0
  %167 = vmatpush1.msra.mxu0 0.0
  %168 = vmatprep.subr.mxu0 0.0
  %169 = vmatpush1.msra.mxu0 0.0
  %170 = vmatprep.subr.mxu0 0.0
  %171 = vmatpush1.msra.mxu0 0.0
  %172 = vmatprep.subr.mxu0 0.0
  %173 = vmatpush1.msra.mxu0 0.0
  %174 = vmatprep.mubr.f32.mxu0 0.0
  %175 = vmatmul.mubr.f32.gmra.mrb[0].mxu0 %v26
  %v176 = vpop.f32.mrb[0].mxu0
  %v177 = vadd.f32 0.0, %v176
  %v178 = vpop.f32.mrb[0].mxu0
  %179 = vmatprep.mubr.f32.mxu0 0.0
  %180 = vmatmul.mubr.f32.gmra.mrb[0].mxu0 %v29
  %v181 = vpop.f32.mrb[0].mxu0
  %v182 = vadd.f32 0.0, %v181
  %v183 = vpop.f32.mrb[0].mxu0
  %184 = vdwg.mxu0
  %vm185 = vcmask 64512
  %v186 = vsel %vm185, %v98, -inf
  %v187 = vrot.slane %v186, 4
  %v188 = vmax.f32 %v186, %v187
  %v189 = vrot.slane %v188, 2
  %v190 = vmax.f32 %v188, %v189
  %v191 = vrot.slane %v190, 1
  %v192 = vmax.f32 %v190, %v191
  %v193 = vsel %vm185, %v103, -inf
  %v194 = vrot.slane %v193, 4
  %v195 = vmax.f32 %v193, %v194
  %v196 = vrot.slane %v195, 2
  %v197 = vmax.f32 %v195, %v196
  %v198 = vrot.slane %v197, 1
  %v199 = vmax.f32 %v197, %v198
  %v200 = vsub.f32 %v98, %v192
  %v201 = vsub.f32 %v103, %v199
  %v202 = vmul.f32 %v200, 1.442695
  %v203 = vpow.pop %v202
  %v204 = vmul.f32 %v201, 1.442695
  %v205 = vpow.pop %v204
  %v206 = vsel %vm185, %v203, 0.0
  %v207 = vrot.slane %v206, 4
  %v208 = vadd.f32 %v206, %v207
  %v209 = vrot.slane %v208, 2
  %v210 = vadd.f32 %v208, %v209
  %v211 = vrot.slane %v210, 1
  %v212 = vadd.f32 %v210, %v211
  %v213 = vsel %vm185, %v205, 0.0
  %v214 = vrot.slane %v213, 4
  %v215 = vadd.f32 %v213, %v214
  %v216 = vrot.slane %v215, 2
  %v217 = vadd.f32 %v215, %v216
  %v218 = vrot.slane %v217, 1
  %v219 = vadd.f32 %v217, %v218
  %221 = vset.pattern.permute.xlu0 0
  %222 = vperm.xlu0 %221, %v177
  %v223 = vpop.permute.xlu0 %222
  %226 = vset.pattern.permute.xlu0 0
  %227 = vperm.xlu0 %226, %v182
  %v228 = vpop.permute.xlu0 %227
  %v230 = vmul.f32 %v203, %v223
  %v231 = vmul.f32 %v205, %v228
  %v232 = vsel %vm185, %v230, 0.0
  %v233 = vrot.slane %v232, 4
  %v234 = vadd.f32 %v232, %v233
  %v235 = vrot.slane %v234, 2
  %v236 = vadd.f32 %v234, %v235
  %v237 = vrot.slane %v236, 1
  %v238 = vadd.f32 %v236, %v237
  %v239 = vsel %vm185, %v231, 0.0
  %v240 = vrot.slane %v239, 4
  %v241 = vadd.f32 %v239, %v240
  %v242 = vrot.slane %v241, 2
  %v243 = vadd.f32 %v241, %v242
  %v244 = vrot.slane %v243, 1
  %v245 = vadd.f32 %v243, %v244
  %v246 = vrcp.pop %v212
  %v247 = vrcp.pop %v219
  %v248 = vmul.f32 %v238, %v246
  %v249 = vmul.f32 %v245, %v247
  %s250 = sld [smem:[#allocation2]]
  %v251 = vstv %s250
  %v252 = vadd.f32 %v248, %v251
  %v253 = vadd.f32 %v249, %v251
  %v254 = vlaneseq
  %v255 = vshrl.u32 %v254, 7
  %v256 = vlaneseq
  %v257 = vand.u32 %v256, 127
  %vm258 = vcmp.eq.s32.totalorder %v255, %v257
  %v259 = vsel %vm258, 1.0, 0.0
  %vm262 = vcmask 1041409
  %v263 = vsel %vm262, %v253, %v252
  %v265 = vsel %vm185, %v259, 0
  %v267 = vsel %vm185, %v263, 0
  %269 = vmatprep.subr.mxu0 0.0
  %270 = vmatpush1.xpose.msra.mxu0 %v267
  %271 = vmatprep.subr.mxu0 0.0
  %272 = vmatpush1.xpose.msra.mxu0 0.0
  %273 = vmatprep.subr.mxu0 0.0
  %274 = vmatpush1.xpose.msra.mxu0 0.0
  %275 = vmatprep.subr.mxu0 0.0
  %276 = vmatpush1.xpose.msra.mxu0 0.0
  %277 = vmatprep.subr.mxu0 0.0
  %278 = vmatpush1.xpose.msra.mxu0 0.0
  %279 = vmatprep.subr.mxu0 0.0
  %280 = vmatpush1.xpose.msra.mxu0 0.0
  %281 = vmatprep.subr.mxu0 0.0
  %282 = vmatpush1.xpose.msra.mxu0 0.0
  %283 = vmatprep.subr.mxu0 0.0
  %284 = vmatpush1.xpose.msra.mxu0 0.0
  %285 = vmatprep.subr.mxu0 0.0
  %286 = vmatpush1.xpose.msra.mxu0 0.0
  %287 = vmatprep.subr.mxu0 0.0
  %288 = vmatpush1.xpose.msra.mxu0 0.0
  %289 = vmatprep.subr.mxu0 0.0
  %290 = vmatpush1.xpose.msra.mxu0 0.0
  %291 = vmatprep.subr.mxu0 0.0
  %292 = vmatpush1.xpose.msra.mxu0 0.0
  %293 = vmatprep.subr.mxu0 0.0
  %294 = vmatpush1.xpose.msra.mxu0 0.0
  %295 = vmatprep.subr.mxu0 0.0
  %296 = vmatpush1.xpose.msra.mxu0 0.0
  %297 = vmatprep.subr.mxu0 0.0
  %298 = vmatpush1.xpose.msra.mxu0 0.0
  %299 = vmatprep.subr.mxu0 0.0
  %300 = vmatpush1.xpose.msra.mxu0 0.0
  %301 = vmatprep.subr.mxu0 0.0
  %302 = vmatpush1.xpose.msra.mxu0 0.0
  %303 = vmatprep.subr.mxu0 0.0
  %304 = vmatpush1.xpose.msra.mxu0 0.0
  %305 = vmatprep.subr.mxu0 0.0
  %306 = vmatpush1.xpose.msra.mxu0 0.0
  %307 = vmatprep.subr.mxu0 0.0
  %308 = vmatpush1.xpose.msra.mxu0 0.0
  %309 = vmatprep.subr.mxu0 0.0
  %310 = vmatpush1.xpose.msra.mxu0 0.0
  %311 = vmatprep.subr.mxu0 0.0
  %312 = vmatpush1.xpose.msra.mxu0 0.0
  %313 = vmatprep.subr.mxu0 0.0
  %314 = vmatpush1.xpose.msra.mxu0 0.0
  %315 = vmatprep.subr.mxu0 0.0
  %316 = vmatpush1.xpose.msra.mxu0 0.0
  %317 = vmatprep.subr.mxu0 0.0
  %318 = vmatpush1.xpose.msra.mxu0 0.0
  %319 = vmatprep.subr.mxu0 0.0
  %320 = vmatpush1.xpose.msra.mxu0 0.0
  %321 = vmatprep.subr.mxu0 0.0
  %322 = vmatpush1.xpose.msra.mxu0 0.0
  %323 = vmatprep.subr.mxu0 0.0
  %324 = vmatpush1.xpose.msra.mxu0 0.0
  %325 = vmatprep.subr.mxu0 0.0
  %326 = vmatpush1.xpose.msra.mxu0 0.0
  %327 = vmatprep.subr.mxu0 0.0
  %328 = vmatpush1.xpose.msra.mxu0 0.0
  %329 = vmatprep.subr.mxu0 0.0
  %330 = vmatpush1.xpose.msra.mxu0 0.0
  %331 = vmatprep.subr.mxu0 0.0
  %332 = vmatpush1.xpose.msra.mxu0 0.0
  %333 = vmatprep.mubr.f32.mxu0 0.0
  %334 = vmatmul.mubr.f32.gmra.mrb[0].mxu0 %v265
  %v335 = vpop.f32.mrb[0].mxu0
  %v336 = vadd.f32 0.0, %v335
  %v337 = vpop.f32.mrb[0].mxu0
  %338 = vdwg.mxu0
  %v339 = vsub.f32 0.0, %v336
  %v340 = vmul.f32 %v339, 1.442695
  %v341 = vpow.pop %v340
  %v342 = vadd.f32 %v341, 1.0
  %v343 = vrcp.pop %v342
  %vm344 = vcmask 15360
  %345 = vst.msk [vmem:[%s4] sm:$0xff] %vm344, %v343
  // Predicated region
  $region18: #{tpu_custom_call.1} parent=0 // pred_check
    _
  $region19: #{tpu_custom_call.1} parent=0 // pred_check_branch
    %347 = sbr.rel (0) target = $region21
  $region20: #{tpu_custom_call.1} parent=0 // pred_region
    _
  $region21: #{tpu_custom_call.1} parent=0 // pred_fallthru
    _
  // Predicated region
  $region22: #{tpu_custom_call.1} parent=0 // pred_check
    _
  $region23: #{tpu_custom_call.1} parent=0 // pred_check_branch
    %349 = sbr.rel (0) target = $region25
  $region24: #{tpu_custom_call.1} parent=0 // pred_region
    _
  $region25: #{tpu_custom_call.1} parent=0 // pred_fallthru
    _

</llo_original>
